<compile_context>
chip_gen: v7x
topology: tpu7x:2x2x1
jax: 0.10.0
libtpu: 0.0.40
codegen_flags: <defaults>
</compile_context>

<pallas_src>
import jax
import jax.numpy as jnp
import numpy as np
from jax.experimental import pallas as pl
from jax.experimental.pallas import tpu as pltpu


def _hbm_copy_kernel(x_hbm, o_hbm, sem):
    # Single HBM->HBM DMA of the whole array; no VMEM staging.
    cp = pltpu.make_async_copy(x_hbm, o_hbm, sem)
    cp.start()
    cp.wait()


def _materialized_copy(attention):
    """Produce an independent HBM buffer holding `attention` via one DMA."""
    return pl.pallas_call(
        _hbm_copy_kernel,
        out_shape=jax.ShapeDtypeStruct(attention.shape, attention.dtype),
        in_specs=[pl.BlockSpec(memory_space=pl.ANY)],
        out_specs=pl.BlockSpec(memory_space=pl.ANY),
        scratch_shapes=[pltpu.SemaphoreType.DMA],
    )(attention)


def logic_encoder_forward(mem, attention, t: int, materialize: bool = False):
    """Pallas/JAX implementation of LogicEncoder.forward.

    Args:
      mem:         (batch, seq, latent_dim) -- unused at t == 0 (kept for parity).
      attention:   (batch, latent_dim)
      t:           environment timestep (static Python int).
      materialize: if True, return an independent copy produced by a single
                   HBM->HBM DMA kernel; otherwise return `attention` directly
                   (the zero-cost path).
    """
    if t != 0:
        # Matches the PyTorch module exactly.
        raise NotImplementedError
    del mem  # not consumed at t == 0, same as the reference module
    if not materialize:
        # Top-value optimization: an identity is a no-op, launch nothing.
        return attention
    return _materialized_copy(attention)


class LogicEncoder:
    """JAX/Pallas counterpart of the PyTorch LogicEncoder (no parameters)."""

    def __init__(self, latent_dim: int):
        self.latent_dim = latent_dim

    def __call__(self, mem, attention, t: int, materialize: bool = False):
        return logic_encoder_forward(mem, attention, t, materialize=materialize)


if __name__ == "__main__":
    key = jax.random.PRNGKey(0)
    k_mem, k_att, k_big = jax.random.split(key, 3)

    batch, seq, latent_dim = 2, 8, 32
    mem = jax.random.normal(k_mem, (batch, seq, latent_dim), dtype=jnp.float32)
    attention = jax.random.normal(k_att, (batch, latent_dim), dtype=jnp.float32)

    encoder = LogicEncoder(latent_dim)

    # 1) Default path (env.t == 0): identity, no kernel launched.
    fast = encoder(mem, attention, t=0)
    assert fast is attention

    # 2) Materialized copy: single HBM->HBM DMA, small / odd shape.
    out_small = jax.block_until_ready(
        encoder(mem, attention, t=0, materialize=True))
    assert out_small.shape == (batch, latent_dim)
    assert out_small.dtype == jnp.float32
    # No aliasing/donation: the original `attention` is still valid and equal.
    assert np.array_equal(np.asarray(out_small), np.asarray(attention))

    # 3) Materialized copy on a larger, lane-aligned shape.
    big = jax.random.normal(k_big, (64, 512), dtype=jnp.float32)
    out_big = jax.block_until_ready(
        logic_encoder_forward(None, big, t=0, materialize=True))
    assert out_big.shape == big.shape
    assert np.array_equal(np.asarray(out_big), np.asarray(big))

    print("KERNEL_OK")
</pallas_src>

<mosaic_0001>
module attributes {stable_mosaic.version = 11 : i64} {
  func.func @_hbm_copy_kernel(%arg0: memref<2x32xf32, #tpu.memory_space<any>>, %arg1: memref<2x32xf32, #tpu.memory_space<any>>, %arg2: memref<!tpu.dma_semaphore, #tpu.memory_space<semaphore_mem>>) attributes {dimension_semantics = [], scalar_prefetch = 0 : i64, scratch_operands = 1 : i64, tpu.core_type = #tpu.core_type<tc>} {
    tpu.enqueue_dma source(%arg0 : memref<2x32xf32, #tpu.memory_space<any>>) target(%arg1 : memref<2x32xf32, #tpu.memory_space<any>>) target_semaphore(%arg2 : memref<!tpu.dma_semaphore, #tpu.memory_space<semaphore_mem>>)
    tpu.wait_dma2 semaphore(%arg2 : memref<!tpu.dma_semaphore, #tpu.memory_space<semaphore_mem>>) src(%arg0 : memref<2x32xf32, #tpu.memory_space<any>>) dst(%arg1 : memref<2x32xf32, #tpu.memory_space<any>>)
    return
  }
}

</mosaic_0001>

<llo_original>
// kernel: tpu_custom_call.1
$region0: #{tpu_custom_call.1}
  #allocation0 [shape = 'u32[]', space=smem, size = 0x4, offset = 0x4, fixed_abs, tag = 'smem constant byte address 0x4 - core index']
  #allocation1 [shape = 'u32[144,128]{1,0:T(1,128)}', space=vmem, size = 0x12000, scoped, tag = 'internal scratch']
  #allocation2 [shape = 's32[1]{0}', space=sflag, size = 0x4, scoped, tag = 'scratch operand']
  #allocation3 [shape = 's32[]', space=sflag, size = 0x4, offset = 0, fixed_abs, tag = 'sflag constant byte address 0x0 - dummy sync flag']
  #allocation4 [shape = 'u32[0]{0}', space=smem, size = 0, offset = 0, fixed_abs, tag = 'smem constant byte address 0x0 - null']
  %s0 = inlined_call_operand.hbm [shape: f32[2,32], index: 0, kind: input, shape index: {}]
  %s1 = inlined_call_operand.hbm [shape: f32[2,32], index: 1, kind: output, shape index: {}]
  %s2 = sld [smem:[#allocation0]]
  $region2: #{tpu_custom_call.1} parent=0
    _
  %s4 = ssub.s32 1, %s2
  %s5 = scalar_select 0, %s4, %s2
  %s7 = sshll.u32 1, 14
  %s8 = sxor.u32 4294967295, %s7
  %s11 = sshll.u32 3, 24
  %s12 = sxor.u32 4294967295, %s11
  %s13 = sand.u32 0, %s12
  %s15 = sor.u32 %s13, 0
  %18 = dma.general %s0, 32, %s1, [#allocation2], [#allocation3], [#allocation4], %s15, 0
  %s19 = smul.u32 2, 1
  %s20 = sshll.u32 %s19, 4
  %21 = dma.done [#allocation2], %s20
  %22 = vsyncmov [#allocation2]
  %s23 = vpop.sfrf %22
  %p24 = scmp.eq.s32.totalorder %s23, 0
  %p25 = pneg %p24
  %27 = shalt.err (%p25)

</llo_original>
